<compile_context>
chip_gen: v6e
topology: v6e:2x2x1
jax: 0.10.0
libtpu: 0.0.40
codegen_flags: <defaults>
</compile_context>

<pallas_src>
import math

import jax
import jax.numpy as jnp
from jax import lax
from jax.experimental import pallas as pl
from jax.experimental.pallas import tpu as pltpu

_MIB = 1024 * 1024
_MAX_FUSED = 4          # max tensors fused into one pallas_call
_COEF_BLOCK_CAP = _MIB  # per-table coefficient block cap (f32 bytes)
_X_TOTAL_TARGET = 6 * _MIB  # target x bytes per grid step, summed over fused tensors


# --------------------------------------------------------------------------- #
# Kernel
# --------------------------------------------------------------------------- #
def _make_rotary_kernel(n_tensors, d_feat, kd):
    """Kernel over blocks: x (reps, rt, kd), coefficients (rt, kd).

    out = x * c + swap * s, with
      c    = cos(theta)                     (1.0 on the non-rotated tail)
      s    = -sin(theta) on even feature lanes, +sin(theta) on odd lanes
             (0.0 on the non-rotated tail)
      swap = x[j+1] on even feature lanes, x[j-1] on odd feature lanes,
    which reproduces the interleaved rotate_half rotary update.  The even/odd
    select (not a zero-coefficient trick) guarantees the lane rolls never pick
    a value from an adjacent folded row or across the circular wrap.
    """

    def kernel(c_ref, s_ref, *xo_refs):
        x_refs = xo_refs[:n_tensors]
        o_refs = xo_refs[n_tensors:]
        c = c_ref[...].astype(jnp.float32)[None]  # (1, rt, kd)
        s = s_ref[...].astype(jnp.float32)[None]
        # Hoisted lane-parity mask (one tiny iota per grid step, 1 vreg).
        lane = lax.broadcasted_iota(jnp.int32, (1, 1, kd), 2)
        even = (lane % d_feat) % 2 == 0
        for x_ref, o_ref in zip(x_refs, o_refs):
            x = x_ref[...].astype(jnp.float32)          # (reps, rt, kd)
            nxt = pltpu.roll(x, shift=kd - 1, axis=2)   # nxt[j] = x[j+1 (mod kd)]
            prv = pltpu.roll(x, shift=1, axis=2)        # prv[j] = x[j-1 (mod kd)]
            swap = jnp.where(even, nxt, prv)
            # TODO(synk): integer dtypes round-trip through f32 here (exact for
            # representable ints) instead of a dtype-preserving concat.
            o_ref[...] = (x * c + swap * s).astype(o_ref.dtype)

    return kernel


# --------------------------------------------------------------------------- #
# Layout planning
# --------------------------------------------------------------------------- #
def _plan_lane_fold(d_feat, p_total):
    """Return (k, p_pad): fold k spatial rows onto the lane axis (kd = k*d_feat
    a multiple of 128 lanes -> full-width unmasked stores), zero-padding the
    spatial rows to p_pad when needed."""
    if d_feat % 128 == 0:
        return 1, p_total
    k0 = 128 // math.gcd(d_feat, 128)
    if p_total % k0 == 0:
        return k0, p_total
    p_pad = ((p_total + k0 - 1) // k0) * k0
    if p_pad * 4 <= p_total * 5:
        # <=25% padded rows: the pad copy is cheaper than d_feat-of-128-lane
        # masked stores for the whole tensor.
        return k0, p_pad
    # TODO(synk): heavy padding would cost more HBM traffic than masked stores
    # save; fall back to lane-sparse (kd == d_feat) blocks in that corner case.
    return 1, p_total


def _choose_layout(batch, p_rows, kd, itemsize, n_tensors):
    """Pick (reps, row_tile).

    reps     : batch entries folded into one block (third-from-last block dim,
               coefficient block broadcast over it in-kernel).
    row_tile : coefficient-period rows per block (second-to-last block dim).
    Sized from the REAL itemsize; coefficient blocks capped at 1 MiB/table.
    """
    coef_row_cap = max(8, _COEF_BLOCK_CAP // (kd * 4))
    x_target = max(_MIB // 2, min(3 * _MIB, _X_TOTAL_TARGET // max(n_tensors, 1)))
    x_row_cap = max(1, x_target // (kd * itemsize))
    max_rt = min(coef_row_cap, x_row_cap)

    if p_rows <= max_rt:
        # Whole coefficient period fits in one block; fold batch entries to
        # keep blocks near the target size (no coefficient replication).
        per_entry = p_rows * kd * itemsize
        max_reps = max(1, x_target // max(per_entry, 1))
        reps = 1
        for cand in range(min(batch, max_reps), 0, -1):
            if batch % cand == 0:
                reps = cand
                break
        return reps, p_rows

    # Spatial rows alone exceed the target: one batch entry per block, tile rows.
    for cand in range(min(p_rows, max_rt), 7, -1):
        if cand % 8 == 0 and p_rows % cand == 0:
            return 1, cand
    rt = max(8, (max_rt // 8) * 8)  # uneven tail block is fine (masked writes)
    return 1, min(rt, p_rows)


# --------------------------------------------------------------------------- #
# pallas_call wrapper (fused over tensors with identical batch/dtype)
# --------------------------------------------------------------------------- #
def _apply_rotary_pallas(xs, c2, s2, reps, row_tile, d_feat):
    """xs: list of (B, p_rows, kd) arrays; c2/s2: (p_rows, kd) coefficient tables."""
    n = len(xs)
    b, p_rows, kd = xs[0].shape
    groups = b // reps
    n_row_blocks = pl.cdiv(p_rows, row_tile)

    # Coefficient block index depends only on the OUTER (row-block) grid axis;
    # the batch-group axis streams underneath it on the inner axis, so each
    # coefficient block is DMA'd once per outer step and reused for all groups.
    coef_spec = pl.BlockSpec((row_tile, kd), lambda j, i: (j, 0))
    x_spec = pl.BlockSpec((reps, row_tile, kd), lambda j, i: (i, j, 0))
    # TODO(synk): pl.Buffered(1) on the coefficient specs would drop their dead
    # double buffer on v7x; with the <=1 MiB per-table cap the saving is <=2 MiB,
    # so it is omitted to keep lowering maximally portable.
    # TODO(synk): add input_output_aliases={i+2: i} when callers donate inputs.

    # Megacore: split the 2 TensorCores along the coefficient-period axis when
    # it has >=2 blocks (keeps per-core coefficient residency); otherwise make
    # sure the batch-group axis stays parallel so work isn't pinned to one core.
    if n_row_blocks >= 2:
        dim_sem = ("parallel", "arbitrary")
    else:
        dim_sem = ("arbitrary", "parallel")

    return pl.pallas_call(
        _make_rotary_kernel(n, d_feat, kd),
        out_shape=tuple(jax.ShapeDtypeStruct(x.shape, x.dtype) for x in xs),
        grid=(n_row_blocks, groups),
        in_specs=[coef_spec, coef_spec] + [x_spec] * n,
        out_specs=tuple(x_spec for _ in xs),
        compiler_params=pltpu.CompilerParams(
            dimension_semantics=dim_sem,
            vmem_limit_bytes=32 * _MIB,  # explicit: v5e default scoped VMEM is 16 MiB
        ),
    )(c2, s2, *xs)


# --------------------------------------------------------------------------- #
# Module
# --------------------------------------------------------------------------- #
class RotaryEmbHeadsInplace:
    """JAX/Pallas port of the PyTorch RotaryEmbHeadsInplace module (forward only)."""

    def __init__(self, in_channels=16, freqs_for="pixel", max_freq=256, theta=10000,
                 num_freqs=1):
        dim = in_channels // 4
        self.freqs_for = freqs_for
        if freqs_for == "pixel":
            self.freqs = (
                jnp.linspace(1.0, max_freq / 2.0, dim // 2, dtype=jnp.float32) * math.pi
            )
        elif freqs_for == "lang":
            self.freqs = 1.0 / (
                theta ** (jnp.arange(0, dim, 2, dtype=jnp.float32)[: dim // 2] / dim)
            )
        else:  # 'constant'
            self.freqs = jnp.ones((num_freqs,), dtype=jnp.float32)
        # TODO(synk): cached_freqs / learned_freq buffers are stateful caching /
        # training-only machinery (unused for 'pixel' freqs); not ported.

    def _axial_freqs(self, dims):
        num = len(dims)
        all_f = []
        for ind, d in enumerate(dims):
            if self.freqs_for == "pixel":
                pos = jnp.linspace(-1.0, 1.0, d, dtype=jnp.float32)
            else:
                pos = jnp.arange(d, dtype=jnp.float32)
            f = pos[:, None] * self.freqs[None, :]  # (d, dim//2)
            f = jnp.repeat(f, 2, axis=-1)           # repeat_interleave -> (d, dim)
            shape = [1] * num + [f.shape[-1]]
            shape[ind] = d
            all_f.append(jnp.reshape(f, shape))
        target = tuple(dims) + (all_f[0].shape[-1],)
        all_f = [jnp.broadcast_to(a, target) for a in all_f]
        return jnp.concatenate(all_f, axis=-1)  # (*dims, num * dim)

    def _coefficient_tables(self, dims, d_feat, p_pad):
        """cos / sign-folded sin tables of shape (p_pad, d_feat), f32."""
        freqs = self._axial_freqs(dims)  # (*dims, rot)
        rot = freqs.shape[-1]
        assert rot <= d_feat, (
            f"feature dimension {d_feat} is not of sufficient size to rotate "
            f"in all the positions {rot}")
        assert rot % 2 == 0, "rotary feature prefix must cover whole (2i, 2i+1) pairs"
        p_total = 1
        for d in dims:
            p_total *= int(d)
        f2 = freqs.reshape(p_total, rot).astype(jnp.float32)
        if rot < d_feat:
            # zero angles on the untouched tail: cos=1, sin=0 -> pass-through
            f2 = jnp.concatenate(
                [f2, jnp.zeros((p_total, d_feat - rot), jnp.float32)], axis=-1)
        if p_pad > p_total:
            f2 = jnp.concatenate(
                [f2, jnp.zeros((p_pad - p_total, d_feat), jnp.float32)], axis=0)
        c = jnp.cos(f2)
        sign = jnp.where((jnp.arange(d_feat) % 2 == 0)[None, :], -1.0, 1.0)
        s = jnp.sin(f2) * sign  # zero on the tail / padded rows
        return c, s

    def __call__(self, tensors_list):
        x0 = tensors_list[0]
        dims = x0.shape[1:-1]
        d_feat = int(x0.shape[-1])
        p_total = 1
        for d in dims:
            p_total *= int(d)
        for t in tensors_list:
            assert t.shape[1:] == x0.shape[1:], (
                "all tensors must share the non-batch shape of tensors_list[0]")

        # Lane densification plan (full-width stores) + coefficient tables.
        k, p_pad = _plan_lane_fold(d_feat, p_total)
        kd = k * d_feat
        p_rows = p_pad // k
        c, s = self._coefficient_tables(dims, d_feat, p_pad)
        c2 = c.reshape(p_rows, kd)
        s2 = s.reshape(p_rows, kd)

        outs = [None] * len(tensors_list)
        # Fuse tensors with identical (batch, dtype) into one pallas_call so
        # coefficient reads and pipeline warmup are amortized across them.
        groups_map = {}
        for idx, t in enumerate(tensors_list):
            key = (int(t.shape[0]), jnp.dtype(t.dtype).name)
            groups_map.setdefault(key, []).append(idx)

        for (b, dtype_name), idxs in groups_map.items():
            dtype = jnp.dtype(dtype_name)
            itemsize = dtype.itemsize
            coef_dtype = jnp.bfloat16 if dtype == jnp.bfloat16 else jnp.float32
            cg = c2.astype(coef_dtype)
            sg = s2.astype(coef_dtype)
            for c0 in range(0, len(idxs), _MAX_FUSED):
                chunk = idxs[c0:c0 + _MAX_FUSED]
                reps, row_tile = _choose_layout(b, p_rows, kd, itemsize, len(chunk))
                xs3 = []
                for i in chunk:
                    x = tensors_list[i].reshape(b, p_total, d_feat)
                    if p_pad > p_total:
                        x = jnp.pad(x, ((0, 0), (0, p_pad - p_total), (0, 0)))
                    xs3.append(x.reshape(b, p_rows, kd))
                ys3 = _apply_rotary_pallas(xs3, cg, sg, reps, row_tile, d_feat)
                for i, y3 in zip(chunk, ys3):
                    y = y3.reshape(b, p_pad, d_feat)
                    if p_pad > p_total:
                        y = y[:, :p_total, :]
                    outs[i] = y.reshape(tensors_list[i].shape)
        return outs


# ----- pure-JAX reference mirroring the PyTorch code (for a sanity check) -----
def _rotate_half_ref(x):
    x1 = x[..., 0::2]
    x2 = x[..., 1::2]
    y = jnp.stack((-x2, x1), axis=-1)
    return y.reshape(x.shape)


def _apply_rotary_ref(freqs, t):
    rot = freqs.shape[-1]
    t_mid = t[..., :rot].astype(jnp.float32)
    t_right = t[..., rot:]
    t_tr = t_mid * jnp.cos(freqs) + _rotate_half_ref(t_mid) * jnp.sin(freqs)
    return jnp.concatenate([t_tr.astype(t.dtype), t_right], axis=-1)


if __name__ == "__main__":
    key = jax.random.PRNGKey(0)
    k1, k2, k3, k4 = jax.random.split(key, 4)
    # (BATCH=2, HEADS=4, H=8, W=8, DIM=16) -> axial dims (4, 8, 8), rot = 3*4 = 12
    x1 = jax.random.normal(k1, (2, 4, 8, 8, 16), dtype=jnp.float32)
    x2 = jax.random.normal(k2, (2, 4, 8, 8, 16), dtype=jnp.float32)

    module = RotaryEmbHeadsInplace(in_channels=16, freqs_for="pixel", max_freq=256)
    outs = module([x1, x2])          # fused: both tensors in one pallas_call
    outs = [jax.block_until_ready(o) for o in outs]

    freqs_ref = module._axial_freqs(x1.shape[1:-1])
    for xin, yout in zip([x1, x2], outs):
        ref = _apply_rotary_ref(freqs_ref, xin)
        err = float(jnp.max(jnp.abs(yout - ref)))
        assert jnp.allclose(yout, ref, atol=1e-4, rtol=1e-4), err

    # 2 axial dims: (BATCH=2, HEADS=4, S=8, DIM=16)
    x3 = jax.random.normal(k3, (2, 4, 8, 16), dtype=jnp.float32)
    (y3,) = module([x3])
    y3 = jax.block_until_ready(y3)
    ref3 = _apply_rotary_ref(module._axial_freqs(x3.shape[1:-1]), x3)
    err3 = float(jnp.max(jnp.abs(y3 - ref3)))
    assert jnp.allclose(y3, ref3, atol=1e-4, rtol=1e-4), err3

    # bf16 input exercises the bf16 coefficient path
    x4 = jax.random.normal(k4, (2, 4, 8, 8, 16), dtype=jnp.bfloat16)
    (y4,) = module([x4])
    y4 = jax.block_until_ready(y4)
    ref4 = _apply_rotary_ref(freqs_ref, x4.astype(jnp.float32))
    err4 = float(jnp.max(jnp.abs(y4.astype(jnp.float32) - ref4)))
    assert err4 < 5e-2, err4

    print("KERNEL_OK")
</pallas_src>

<mosaic_0001>
module attributes {stable_mosaic.version = 11 : i64} {
  func.func @kernel(%arg0: i32, %arg1: i32, %arg2: memref<32x128xf32, #tpu.memory_space<vmem>>, %arg3: memref<32x128xf32, #tpu.memory_space<vmem>>, %arg4: memref<2x32x128xf32, #tpu.memory_space<vmem>>, %arg5: memref<2x32x128xf32, #tpu.memory_space<vmem>>, %arg6: memref<2x32x128xf32, #tpu.memory_space<vmem>>, %arg7: memref<2x32x128xf32, #tpu.memory_space<vmem>>) attributes {dimension_semantics = [#tpu.dimension_semantics<arbitrary>, #tpu.dimension_semantics<parallel>], iteration_bounds = array<i64: 1, 1>, scalar_prefetch = 0 : i64, scratch_operands = 0 : i64, tpu.core_type = #tpu.core_type<tc>, window_params = [{transform_indices = @transform_0, window_bounds = array<i64: 32, 128>}, {transform_indices = @transform_1, window_bounds = array<i64: 32, 128>}, {transform_indices = @transform_2, window_bounds = array<i64: 2, 32, 128>}, {transform_indices = @transform_3, window_bounds = array<i64: 2, 32, 128>}, {transform_indices = @transform_4, window_bounds = array<i64: 2, 32, 128>}, {transform_indices = @transform_5, window_bounds = array<i64: 2, 32, 128>}]} {
    %c0 = arith.constant 0 : index
    %c0_0 = arith.constant 0 : index
    %0 = vector.load %arg2[%c0, %c0_0] : memref<32x128xf32, #tpu.memory_space<vmem>>, vector<32x128xf32>
    %1 = vector.shape_cast %0 : vector<32x128xf32> to vector<1x32x128xf32>
    %c0_1 = arith.constant 0 : index
    %c0_2 = arith.constant 0 : index
    %2 = vector.load %arg3[%c0_1, %c0_2] : memref<32x128xf32, #tpu.memory_space<vmem>>, vector<32x128xf32>
    %3 = vector.shape_cast %2 : vector<32x128xf32> to vector<1x32x128xf32>
    %4 = tpu.iota {dimensions = array<i32: 2>} : vector<1x1x128xi32>
    %c16_i32 = arith.constant 16 : i32
    %c0_i32 = arith.constant 0 : i32
    %5 = arith.cmpi eq, %c16_i32, %c0_i32 : i32
    %c1_i32 = arith.constant 1 : i32
    %6 = arith.select %5, %c1_i32, %c16_i32 : i32
    %7 = vector.broadcast %6 : i32 to vector<1x1x128xi32>
    %8 = arith.remsi %4, %7 : vector<1x1x128xi32>
    %c0_i32_3 = arith.constant 0 : i32
    %9 = vector.broadcast %c0_i32_3 : i32 to vector<1x1x128xi32>
    %10 = arith.cmpi ne, %8, %9 : vector<1x1x128xi32>
    %c0_i32_4 = arith.constant 0 : i32
    %11 = vector.broadcast %c0_i32_4 : i32 to vector<1x1x128xi32>
    %12 = arith.cmpi slt, %8, %11 : vector<1x1x128xi32>
    %c0_i32_5 = arith.constant 0 : i32
    %13 = arith.cmpi slt, %6, %c0_i32_5 : i32
    %14 = vector.broadcast %13 : i1 to vector<1x1x128xi1>
    %15 = vector.broadcast %14 : vector<1x1x128xi1> to vector<1x1x128xi1>
    %16 = arith.xori %12, %15 : vector<1x1x128xi1>
    %17 = arith.andi %16, %10 : vector<1x1x128xi1>
    %18 = vector.broadcast %6 : i32 to vector<1x1x128xi32>
    %19 = arith.addi %8, %18 : vector<1x1x128xi32>
    %20 = arith.select %17, %19, %8 : vector<1x1x128xi1>, vector<1x1x128xi32>
    %c2_i32 = arith.constant 2 : i32
    %c0_i32_6 = arith.constant 0 : i32
    %21 = arith.cmpi eq, %c2_i32, %c0_i32_6 : i32
    %c1_i32_7 = arith.constant 1 : i32
    %22 = arith.select %21, %c1_i32_7, %c2_i32 : i32
    %23 = vector.broadcast %22 : i32 to vector<1x1x128xi32>
    %24 = arith.remsi %20, %23 : vector<1x1x128xi32>
    %c0_i32_8 = arith.constant 0 : i32
    %25 = vector.broadcast %c0_i32_8 : i32 to vector<1x1x128xi32>
    %26 = arith.cmpi ne, %24, %25 : vector<1x1x128xi32>
    %c0_i32_9 = arith.constant 0 : i32
    %27 = vector.broadcast %c0_i32_9 : i32 to vector<1x1x128xi32>
    %28 = arith.cmpi slt, %24, %27 : vector<1x1x128xi32>
    %c0_i32_10 = arith.constant 0 : i32
    %29 = arith.cmpi slt, %22, %c0_i32_10 : i32
    %30 = vector.broadcast %29 : i1 to vector<1x1x128xi1>
    %31 = vector.broadcast %30 : vector<1x1x128xi1> to vector<1x1x128xi1>
    %32 = arith.xori %28, %31 : vector<1x1x128xi1>
    %33 = arith.andi %32, %26 : vector<1x1x128xi1>
    %34 = vector.broadcast %22 : i32 to vector<1x1x128xi32>
    %35 = arith.addi %24, %34 : vector<1x1x128xi32>
    %36 = arith.select %33, %35, %24 : vector<1x1x128xi1>, vector<1x1x128xi32>
    %c0_i32_11 = arith.constant 0 : i32
    %37 = vector.broadcast %c0_i32_11 : i32 to vector<1x1x128xi32>
    %38 = arith.cmpi eq, %36, %37 : vector<1x1x128xi32>
    %c0_12 = arith.constant 0 : index
    %c0_13 = arith.constant 0 : index
    %c0_14 = arith.constant 0 : index
    %39 = vector.load %arg4[%c0_12, %c0_13, %c0_14] : memref<2x32x128xf32, #tpu.memory_space<vmem>>, vector<2x32x128xf32>
    %c127_i32 = arith.constant 127 : i32
    %40 = tpu.dynamic_rotate %39 by %c127_i32 dim 2 : vector<2x32x128xf32>, i32 -> vector<2x32x128xf32>
    %c1_i32_15 = arith.constant 1 : i32
    %41 = tpu.dynamic_rotate %39 by %c1_i32_15 dim 2 : vector<2x32x128xf32>, i32 -> vector<2x32x128xf32>
    %42 = vector.shape_cast %38 : vector<1x1x128xi1> to vector<1x1x128xi1>
    %43 = vector.broadcast %42 : vector<1x1x128xi1> to vector<2x32x128xi1>
    %44 = arith.select %43, %40, %41 : vector<2x32x128xi1>, vector<2x32x128xf32>
    %45 = vector.broadcast %1 : vector<1x32x128xf32> to vector<2x32x128xf32>
    %46 = arith.mulf %39, %45 : vector<2x32x128xf32>
    %47 = vector.broadcast %3 : vector<1x32x128xf32> to vector<2x32x128xf32>
    %48 = arith.mulf %44, %47 : vector<2x32x128xf32>
    %49 = arith.addf %46, %48 : vector<2x32x128xf32>
    %c0_16 = arith.constant 0 : index
    %c0_17 = arith.constant 0 : index
    %c0_18 = arith.constant 0 : index
    %50 = vector.load %arg6[%c0_16, %c0_17, %c0_18] : memref<2x32x128xf32, #tpu.memory_space<vmem>>, vector<2x32x128xf32>
    tpu.vector_store %arg6[%c0_16, %c0_17, %c0_18], %49 {strides = array<i32>} : memref<2x32x128xf32, #tpu.memory_space<vmem>>, vector<2x32x128xf32>,
    %c0_19 = arith.constant 0 : index
    %c0_20 = arith.constant 0 : index
    %c0_21 = arith.constant 0 : index
    %51 = vector.load %arg5[%c0_19, %c0_20, %c0_21] : memref<2x32x128xf32, #tpu.memory_space<vmem>>, vector<2x32x128xf32>
    %c127_i32_22 = arith.constant 127 : i32
    %52 = tpu.dynamic_rotate %51 by %c127_i32_22 dim 2 : vector<2x32x128xf32>, i32 -> vector<2x32x128xf32>
    %c1_i32_23 = arith.constant 1 : i32
    %53 = tpu.dynamic_rotate %51 by %c1_i32_23 dim 2 : vector<2x32x128xf32>, i32 -> vector<2x32x128xf32>
    %54 = vector.shape_cast %38 : vector<1x1x128xi1> to vector<1x1x128xi1>
    %55 = vector.broadcast %54 : vector<1x1x128xi1> to vector<2x32x128xi1>
    %56 = arith.select %55, %52, %53 : vector<2x32x128xi1>, vector<2x32x128xf32>
    %57 = vector.broadcast %1 : vector<1x32x128xf32> to vector<2x32x128xf32>
    %58 = arith.mulf %51, %57 : vector<2x32x128xf32>
    %59 = vector.broadcast %3 : vector<1x32x128xf32> to vector<2x32x128xf32>
    %60 = arith.mulf %56, %59 : vector<2x32x128xf32>
    %61 = arith.addf %58, %60 : vector<2x32x128xf32>
    %c0_24 = arith.constant 0 : index
    %c0_25 = arith.constant 0 : index
    %c0_26 = arith.constant 0 : index
    %62 = vector.load %arg7[%c0_24, %c0_25, %c0_26] : memref<2x32x128xf32, #tpu.memory_space<vmem>>, vector<2x32x128xf32>
    tpu.vector_store %arg7[%c0_24, %c0_25, %c0_26], %61 {strides = array<i32>} : memref<2x32x128xf32, #tpu.memory_space<vmem>>, vector<2x32x128xf32>,
    return
  }
  func.func @transform_0(%arg0: i32, %arg1: i32) -> (i32, i32) {
    %c0_i32 = arith.constant 0 : i32
    %c0_i32_0 = arith.constant 0 : i32
    return %arg0, %c0_i32 : i32, i32
  }
  func.func @transform_1(%arg0: i32, %arg1: i32) -> (i32, i32) {
    %c0_i32 = arith.constant 0 : i32
    %c0_i32_0 = arith.constant 0 : i32
    return %arg0, %c0_i32 : i32, i32
  }
  func.func @transform_2(%arg0: i32, %arg1: i32) -> (i32, i32, i32) {
    %c0_i32 = arith.constant 0 : i32
    %c0_i32_0 = arith.constant 0 : i32
    return %arg1, %arg0, %c0_i32 : i32, i32, i32
  }
  func.func @transform_3(%arg0: i32, %arg1: i32) -> (i32, i32, i32) {
    %c0_i32 = arith.constant 0 : i32
    %c0_i32_0 = arith.constant 0 : i32
    return %arg1, %arg0, %c0_i32 : i32, i32, i32
  }
  func.func @transform_4(%arg0: i32, %arg1: i32) -> (i32, i32, i32) {
    %c0_i32 = arith.constant 0 : i32
    %c0_i32_0 = arith.constant 0 : i32
    return %arg1, %arg0, %c0_i32 : i32, i32, i32
  }
  func.func @transform_5(%arg0: i32, %arg1: i32) -> (i32, i32, i32) {
    %c0_i32 = arith.constant 0 : i32
    %c0_i32_0 = arith.constant 0 : i32
    return %arg1, %arg0, %c0_i32 : i32, i32, i32
  }
}

</mosaic_0001>

<llo_original>
// kernel: tpu_custom_call.1
$region0: #{tpu_custom_call.1}
  #allocation0 [shape = 'u32[]', space=smem, size = 0x4, offset = 0x4, fixed_abs, tag = 'smem constant byte address 0x4 - core index']
  #allocation1 [shape = 'u32[144,128]{1,0:T(1,128)}', space=vmem, size = 0x12000, scoped, tag = 'internal scratch']
  %s0 = inlined_call_operand.hbm [shape: f32[32,128], index: 0, kind: input, shape index: {}]
  %s1 = inlined_call_operand.hbm [shape: f32[32,128], index: 1, kind: input, shape index: {}]
  %s2 = inlined_call_operand.hbm [shape: f32[2,32,128], index: 2, kind: input, shape index: {}]
  %s3 = inlined_call_operand.hbm [shape: f32[2,32,128], index: 3, kind: input, shape index: {}]
  %s4 = inlined_call_operand.hbm [shape: f32[2,32,128], index: 4, kind: output, shape index: {0}]
  %s5 = inlined_call_operand.hbm [shape: f32[2,32,128], index: 5, kind: output, shape index: {1}]
  %6 = xla_tuple %s4, %s5
  %s7 = sld [smem:[#allocation0]]
  $region50: #{tpu_custom_call.1} parent=0
    _
  %s9 = ssub.s32 1, %s7
  %s10 = scalar_select 0, %s9, %s7
  $region1: #{tpu_custom_call.1} parent=0
    #allocation2 [shape = 'u8[16384]{0}', space=vmem, size = 0x4000, scoped, tag = 'input window, operand 0, single buffered']
    #allocation3 [shape = 's32[1]{0}', space=sflag, size = 0x4, scoped, tag = 'scoped memory for tpu_custom_call.1']
    #allocation4 [shape = 's32[1]{0}', space=sflag, size = 0x4, scoped, tag = 'scoped memory for tpu_custom_call.1']
    #allocation5 [shape = 'u8[16384]{0}', space=vmem, size = 0x4000, scoped, tag = 'input window, operand 1, single buffered']
    #allocation6 [shape = 's32[1]{0}', space=sflag, size = 0x4, scoped, tag = 'scoped memory for tpu_custom_call.1']
    #allocation7 [shape = 'u8[32768]{0}', space=vmem, size = 0x8000, scoped, tag = 'input window, operand 2, single buffered']
    #allocation8 [shape = 'u8[32768]{0}', space=vmem, size = 0x8000, scoped, tag = 'input window, operand 3, single buffered']
    #allocation9 [shape = 's32[1]{0}', space=sflag, size = 0x4, scoped, tag = 'scoped memory for tpu_custom_call.1']
    #allocation10 [shape = 'u8[32768]{0}', space=vmem, size = 0x8000, scoped, tag = 'output window, operand 0, single buffered']
    #allocation11 [shape = 'u8[32768]{0}', space=vmem, size = 0x8000, scoped, tag = 'output window, operand 1, single buffered']
    #allocation12 [shape = 's32[1]{0}', space=sflag, size = 0x4, scoped, tag = 'scoped memory for tpu_custom_call.1']
    %11 = vsyncpa [#allocation3], 0
    %12 = vsyncpa [#allocation6], 0
    %13 = vsyncpa [#allocation9], 0
    %14 = vsyncpa [#allocation4], 0
    %15 = vsyncpa [#allocation12], 0
    // Predicated region
    $region2: #{tpu_custom_call.1} parent=1 // pred_check
      _
    $region3: #{tpu_custom_call.1} parent=1 // pred_check_branch
      %17 = sbr.rel (0) target = $region5
    $region4: #{tpu_custom_call.1} parent=1 // pred_region
      %s19 = ssub.s32 512, 512
      %20 = vsyncadd [#allocation3], %s19
      %s21 = sshll.u32 [#allocation2], 4
      %s22 = int_to_ptr.vmem [resolvable:$true] %s21
      %27 = dma.hbm_to_vmem [thread:$0]  %s0, 512, %s22, [#allocation3], 128, 128, 8
    $region5: #{tpu_custom_call.1} parent=1 // pred_fallthru
      _
    // Predicated region
    $region6: #{tpu_custom_call.1} parent=1 // pred_check
      _
    $region7: #{tpu_custom_call.1} parent=1 // pred_check_branch
      %29 = sbr.rel (0) target = $region9
    $region8: #{tpu_custom_call.1} parent=1 // pred_region
      %s31 = ssub.s32 512, 512
      %32 = vsyncadd [#allocation6], %s31
      %s33 = sshll.u32 [#allocation5], 4
      %s34 = int_to_ptr.vmem [resolvable:$true] %s33
      %39 = dma.hbm_to_vmem [thread:$0]  %s1, 512, %s34, [#allocation6], 128, 128, 8
    $region9: #{tpu_custom_call.1} parent=1 // pred_fallthru
      _
    // Predicated region
    $region10: #{tpu_custom_call.1} parent=1 // pred_check
      _
    $region11: #{tpu_custom_call.1} parent=1 // pred_check_branch
      %41 = sbr.rel (0) target = $region13
    $region12: #{tpu_custom_call.1} parent=1 // pred_region
      %s43 = ssub.s32 1024, 1024
      %44 = vsyncadd [#allocation6], %s43
      %s45 = sshll.u32 [#allocation7], 4
      %s46 = int_to_ptr.vmem [resolvable:$true] %s45
      %51 = dma.hbm_to_vmem [thread:$0]  %s2, 1024, %s46, [#allocation6], 128, 128, 8
    $region13: #{tpu_custom_call.1} parent=1 // pred_fallthru
      _
    // Predicated region
    $region14: #{tpu_custom_call.1} parent=1 // pred_check
      _
    $region15: #{tpu_custom_call.1} parent=1 // pred_check_branch
      %53 = sbr.rel (0) target = $region17
    $region16: #{tpu_custom_call.1} parent=1 // pred_region
      %s55 = ssub.s32 1024, 1024
      %56 = vsyncadd [#allocation9], %s55
      %s57 = sshll.u32 [#allocation8], 4
      %s58 = int_to_ptr.vmem [resolvable:$true] %s57
      %63 = dma.hbm_to_vmem [thread:$0]  %s3, 1024, %s58, [#allocation9], 128, 128, 8
    $region17: #{tpu_custom_call.1} parent=1 // pred_fallthru
      _
    // Predicated region
    $region18: #{tpu_custom_call.1} parent=1 // pred_check
      _
    $region19: #{tpu_custom_call.1} parent=1 // pred_check_branch
      %65 = sbr.rel (0) target = $region21
    $region20: #{tpu_custom_call.1} parent=1 // pred_region
      %66 = dma.done [#allocation3], 512
    $region21: #{tpu_custom_call.1} parent=1 // pred_fallthru
      _
    // Predicated region
    $region22: #{tpu_custom_call.1} parent=1 // pred_check
      _
    $region23: #{tpu_custom_call.1} parent=1 // pred_check_branch
      %68 = sbr.rel (0) target = $region25
    $region24: #{tpu_custom_call.1} parent=1 // pred_region
      %69 = dma.done [#allocation6], 512
    $region25: #{tpu_custom_call.1} parent=1 // pred_fallthru
      _
    // Predicated region
    $region26: #{tpu_custom_call.1} parent=1 // pred_check
      _
    $region27: #{tpu_custom_call.1} parent=1 // pred_check_branch
      %71 = sbr.rel (0) target = $region29
    $region28: #{tpu_custom_call.1} parent=1 // pred_region
      %72 = dma.done [#allocation6], 1024
    $region29: #{tpu_custom_call.1} parent=1 // pred_fallthru
      _
    // Predicated region
    $region30: #{tpu_custom_call.1} parent=1 // pred_check
      _
    $region31: #{tpu_custom_call.1} parent=1 // pred_check_branch
      %74 = sbr.rel (0) target = $region33
    $region32: #{tpu_custom_call.1} parent=1 // pred_region
      %75 = dma.done [#allocation9], 1024
    $region33: #{tpu_custom_call.1} parent=1 // pred_fallthru
      _
    %v76 = vld [vmem:[#allocation2] sm:$0xff]
    %v77 = vld [vmem:[#allocation2 + $0x8] sm:$0xff]
    %v78 = vld [vmem:[#allocation2 + $0x10] sm:$0xff]
    %v79 = vld [vmem:[#allocation2 + $0x18] sm:$0xff]
    %v80 = vld [vmem:[#allocation5] sm:$0xff]
    %v81 = vld [vmem:[#allocation5 + $0x8] sm:$0xff]
    %v82 = vld [vmem:[#allocation5 + $0x10] sm:$0xff]
    %v83 = vld [vmem:[#allocation5 + $0x18] sm:$0xff]
    %v84 = vlaneseq
    %v85 = vand.u32 %v84, 127
    %vm86 = vcmp.lt.s32.totalorder %v85, 0
    %v87 = vsub.s32 0, %v85
    %v88 = vsel %vm86, %v87, %v85
    %v89 = vshrl.u32 %v88, 4
    %v90 = vand.u32 %v88, 15
    %v91 = vsub.s32 0, %v90
    %v92 = vsel %vm86, %v91, %v90
    %vm93 = vcmp.ne.s32.totalorder %v92, 0
    %vm94 = vcmp.lt.s32.totalorder %v92, 0
    %vm95 = vmand %vm94, %vm93
    %v96 = vadd.s32 %v92, 16
    %v97 = vsel %vm95, %v96, %v92
    %vm98 = vcmp.lt.s32.totalorder %v97, 0
    %v99 = vsub.s32 0, %v97
    %v100 = vsel %vm98, %v99, %v97
    %v101 = vshrl.u32 %v100, 1
    %v102 = vand.u32 %v100, 1
    %v103 = vsub.s32 0, %v102
    %v104 = vsel %vm98, %v103, %v102
    %vm105 = vcmp.ne.s32.totalorder %v104, 0
    %vm106 = vcmp.lt.s32.totalorder %v104, 0
    %vm107 = vmand %vm106, %vm105
    %v108 = vadd.s32 %v104, 2
    %v109 = vsel %vm107, %v108, %v104
    %vm110 = vcmp.eq.s32.totalorder %v109, 0
    %v111 = vld [vmem:[#allocation7] sm:$0xff]
    %v112 = vld [vmem:[#allocation7 + $0x8] sm:$0xff]
    %v113 = vld [vmem:[#allocation7 + $0x10] sm:$0xff]
    %v114 = vld [vmem:[#allocation7 + $0x18] sm:$0xff]
    %v115 = vld [vmem:[#allocation7 + $0x20] sm:$0xff]
    %v116 = vld [vmem:[#allocation7 + $0x28] sm:$0xff]
    %v117 = vld [vmem:[#allocation7 + $0x30] sm:$0xff]
    %v118 = vld [vmem:[#allocation7 + $0x38] sm:$0xff]
    %119 = vrot.lane.b32.xlu0 %v111, 127
    %v120 = vpop.permute.xlu0 %119
    %121 = vrot.lane.b32.xlu0 %v112, 127
    %v122 = vpop.permute.xlu0 %121
    %123 = vrot.lane.b32.xlu0 %v113, 127
    %v124 = vpop.permute.xlu0 %123
    %125 = vrot.lane.b32.xlu0 %v114, 127
    %v126 = vpop.permute.xlu0 %125
    %127 = vrot.lane.b32.xlu0 %v115, 127
    %v128 = vpop.permute.xlu0 %127
    %129 = vrot.lane.b32.xlu0 %v116, 127
    %v130 = vpop.permute.xlu0 %129
    %131 = vrot.lane.b32.xlu0 %v117, 127
    %v132 = vpop.permute.xlu0 %131
    %133 = vrot.lane.b32.xlu0 %v118, 127
    %v134 = vpop.permute.xlu0 %133
    %135 = vrot.lane.b32.xlu0 %v111, 1
    %v136 = vpop.permute.xlu0 %135
    %137 = vrot.lane.b32.xlu0 %v112, 1
    %v138 = vpop.permute.xlu0 %137
    %139 = vrot.lane.b32.xlu0 %v113, 1
    %v140 = vpop.permute.xlu0 %139
    %141 = vrot.lane.b32.xlu0 %v114, 1
    %v142 = vpop.permute.xlu0 %141
    %143 = vrot.lane.b32.xlu0 %v115, 1
    %v144 = vpop.permute.xlu0 %143
    %145 = vrot.lane.b32.xlu0 %v116, 1
    %v146 = vpop.permute.xlu0 %145
    %147 = vrot.lane.b32.xlu0 %v117, 1
    %v148 = vpop.permute.xlu0 %147
    %149 = vrot.lane.b32.xlu0 %v118, 1
    %v150 = vpop.permute.xlu0 %149
    %v151 = vsel %vm110, 1, 0
    %vm152 = vcmp.eq.s32.totalorder %v151, 1
    %v153 = vsel %vm152, %v120, %v136
    %v154 = vsel %vm152, %v122, %v138
    %v155 = vsel %vm152, %v124, %v140
    %v156 = vsel %vm152, %v126, %v142
    %v157 = vsel %vm152, %v128, %v144
    %v158 = vsel %vm152, %v130, %v146
    %v159 = vsel %vm152, %v132, %v148
    %v160 = vsel %vm152, %v134, %v150
    %v161 = vmul.f32 %v111, %v76
    %v162 = vmul.f32 %v112, %v77
    %v163 = vmul.f32 %v113, %v78
    %v164 = vmul.f32 %v114, %v79
    %v165 = vmul.f32 %v115, %v76
    %v166 = vmul.f32 %v116, %v77
    %v167 = vmul.f32 %v117, %v78
    %v168 = vmul.f32 %v118, %v79
    %v169 = vmul.f32 %v153, %v80
    %v170 = vmul.f32 %v154, %v81
    %v171 = vmul.f32 %v155, %v82
    %v172 = vmul.f32 %v156, %v83
    %v173 = vmul.f32 %v157, %v80
    %v174 = vmul.f32 %v158, %v81
    %v175 = vmul.f32 %v159, %v82
    %v176 = vmul.f32 %v160, %v83
    %v177 = vadd.f32 %v161, %v169
    %v178 = vadd.f32 %v162, %v170
    %v179 = vadd.f32 %v163, %v171
    %v180 = vadd.f32 %v164, %v172
    %v181 = vadd.f32 %v165, %v173
    %v182 = vadd.f32 %v166, %v174
    %v183 = vadd.f32 %v167, %v175
    %v184 = vadd.f32 %v168, %v176
    %185 = vst [vmem:[#allocation10] sm:$0xff] %v177
    %186 = vst [vmem:[#allocation10 + $0x8] sm:$0xff] %v178
    %187 = vst [vmem:[#allocation10 + $0x10] sm:$0xff] %v179
    %188 = vst [vmem:[#allocation10 + $0x18] sm:$0xff] %v180
    %189 = vst [vmem:[#allocation10 + $0x20] sm:$0xff] %v181
    %190 = vst [vmem:[#allocation10 + $0x28] sm:$0xff] %v182
    %191 = vst [vmem:[#allocation10 + $0x30] sm:$0xff] %v183
    %192 = vst [vmem:[#allocation10 + $0x38] sm:$0xff] %v184
    %v193 = vld [vmem:[#allocation8] sm:$0xff]
    %v194 = vld [vmem:[#allocation8 + $0x8] sm:$0xff]
    %v195 = vld [vmem:[#allocation8 + $0x10] sm:$0xff]
    %v196 = vld [vmem:[#allocation8 + $0x18] sm:$0xff]
    %v197 = vld [vmem:[#allocation8 + $0x20] sm:$0xff]
    %v198 = vld [vmem:[#allocation8 + $0x28] sm:$0xff]
    %v199 = vld [vmem:[#allocation8 + $0x30] sm:$0xff]
    %v200 = vld [vmem:[#allocation8 + $0x38] sm:$0xff]
    %201 = vrot.lane.b32.xlu0 %v193, 127
    %v202 = vpop.permute.xlu0 %201
    %203 = vrot.lane.b32.xlu0 %v194, 127
    %v204 = vpop.permute.xlu0 %203
    %205 = vrot.lane.b32.xlu0 %v195, 127
    %v206 = vpop.permute.xlu0 %205
    %207 = vrot.lane.b32.xlu0 %v196, 127
    %v208 = vpop.permute.xlu0 %207
    %209 = vrot.lane.b32.xlu0 %v197, 127
    %v210 = vpop.permute.xlu0 %209
    %211 = vrot.lane.b32.xlu0 %v198, 127
    %v212 = vpop.permute.xlu0 %211
    %213 = vrot.lane.b32.xlu0 %v199, 127
    %v214 = vpop.permute.xlu0 %213
    %215 = vrot.lane.b32.xlu0 %v200, 127
    %v216 = vpop.permute.xlu0 %215
    %217 = vrot.lane.b32.xlu0 %v193, 1
    %v218 = vpop.permute.xlu0 %217
    %219 = vrot.lane.b32.xlu0 %v194, 1
    %v220 = vpop.permute.xlu0 %219
    %221 = vrot.lane.b32.xlu0 %v195, 1
    %v222 = vpop.permute.xlu0 %221
    %223 = vrot.lane.b32.xlu0 %v196, 1
    %v224 = vpop.permute.xlu0 %223
    %225 = vrot.lane.b32.xlu0 %v197, 1
    %v226 = vpop.permute.xlu0 %225
    %227 = vrot.lane.b32.xlu0 %v198, 1
    %v228 = vpop.permute.xlu0 %227
    %229 = vrot.lane.b32.xlu0 %v199, 1
    %v230 = vpop.permute.xlu0 %229
    %231 = vrot.lane.b32.xlu0 %v200, 1
    %v232 = vpop.permute.xlu0 %231
    %v233 = vsel %vm152, %v202, %v218
    %v234 = vsel %vm152, %v204, %v220
    %v235 = vsel %vm152, %v206, %v222
    %v236 = vsel %vm152, %v208, %v224
    %v237 = vsel %vm152, %v210, %v226
    %v238 = vsel %vm152, %v212, %v228
    %v239 = vsel %vm152, %v214, %v230
    %v240 = vsel %vm152, %v216, %v232
    %v241 = vmul.f32 %v193, %v76
    %v242 = vmul.f32 %v194, %v77
    %v243 = vmul.f32 %v195, %v78
    %v244 = vmul.f32 %v196, %v79
    %v245 = vmul.f32 %v197, %v76
    %v246 = vmul.f32 %v198, %v77
    %v247 = vmul.f32 %v199, %v78
    %v248 = vmul.f32 %v200, %v79
    %v249 = vmul.f32 %v233, %v80
    %v250 = vmul.f32 %v234, %v81
    %v251 = vmul.f32 %v235, %v82
    %v252 = vmul.f32 %v236, %v83
    %v253 = vmul.f32 %v237, %v80
    %v254 = vmul.f32 %v238, %v81
    %v255 = vmul.f32 %v239, %v82
    %v256 = vmul.f32 %v240, %v83
    %v257 = vadd.f32 %v241, %v249
    %v258 = vadd.f32 %v242, %v250
    %v259 = vadd.f32 %v243, %v251
    %v260 = vadd.f32 %v244, %v252
    %v261 = vadd.f32 %v245, %v253
    %v262 = vadd.f32 %v246, %v254
    %v263 = vadd.f32 %v247, %v255
    %v264 = vadd.f32 %v248, %v256
    %265 = vst [vmem:[#allocation11] sm:$0xff] %v257
    %266 = vst [vmem:[#allocation11 + $0x8] sm:$0xff] %v258
    %267 = vst [vmem:[#allocation11 + $0x10] sm:$0xff] %v259
    %268 = vst [vmem:[#allocation11 + $0x18] sm:$0xff] %v260
    %269 = vst [vmem:[#allocation11 + $0x20] sm:$0xff] %v261
    %270 = vst [vmem:[#allocation11 + $0x28] sm:$0xff] %v262
    %271 = vst [vmem:[#allocation11 + $0x30] sm:$0xff] %v263
    %272 = vst [vmem:[#allocation11 + $0x38] sm:$0xff] %v264
    // Predicated region
    $region34: #{tpu_custom_call.1} parent=1 // pred_check
      _
    $region35: #{tpu_custom_call.1} parent=1 // pred_check_branch
      %274 = sbr.rel (0) target = $region37
    $region36: #{tpu_custom_call.1} parent=1 // pred_region
      %s276 = ssub.s32 1024, 1024
      %277 = vsyncadd [#allocation4], %s276
      %s278 = sshll.u32 [#allocation10], 4
      %s279 = int_to_ptr.vmem [resolvable:$true] %s278
      %284 = dma.vmem_to_hbm [thread:$0]  %s279, 1024, %s4, [#allocation4], 128, 128, 8
    $region37: #{tpu_custom_call.1} parent=1 // pred_fallthru
      _
    // Predicated region
    $region38: #{tpu_custom_call.1} parent=1 // pred_check
      _
    $region39: #{tpu_custom_call.1} parent=1 // pred_check_branch
      %286 = sbr.rel (0) target = $region41
    $region40: #{tpu_custom_call.1} parent=1 // pred_region
      %s288 = ssub.s32 1024, 1024
      %289 = vsyncadd [#allocation12], %s288
      %s290 = sshll.u32 [#allocation11], 4
      %s291 = int_to_ptr.vmem [resolvable:$true] %s290
      %296 = dma.vmem_to_hbm [thread:$0]  %s291, 1024, %s5, [#allocation12], 128, 128, 8
    $region41: #{tpu_custom_call.1} parent=1 // pred_fallthru
      _
    // Predicated region
    $region42: #{tpu_custom_call.1} parent=1 // pred_check
      _
    $region43: #{tpu_custom_call.1} parent=1 // pred_check_branch
      %298 = sbr.rel (0) target = $region45
    $region44: #{tpu_custom_call.1} parent=1 // pred_region
      %299 = dma.done [#allocation4], 1024
    $region45: #{tpu_custom_call.1} parent=1 // pred_fallthru
      _
    // Predicated region
    $region46: #{tpu_custom_call.1} parent=1 // pred_check
      _
    $region47: #{tpu_custom_call.1} parent=1 // pred_check_branch
      %301 = sbr.rel (0) target = $region49
    $region48: #{tpu_custom_call.1} parent=1 // pred_region
      %302 = dma.done [#allocation12], 1024
    $region49: #{tpu_custom_call.1} parent=1 // pred_fallthru
      _
    %303 = vsyncpa [#allocation3], 1
    %304 = vsyncpa [#allocation6], 1
    %305 = vsyncpa [#allocation9], 1
    %306 = vsyncpa [#allocation4], 1
    %307 = vsyncpa [#allocation12], 1

</llo_original>
